<compile_context>
chip_gen: v6e
topology: v6e:2x2x1
jax: 0.10.0
libtpu: 0.0.40
codegen_flags: <defaults>
</compile_context>

<pallas_src>
from functools import partial

import jax
import jax.numpy as jnp
from jax.experimental import pallas as pl
from jax.experimental.pallas import tpu as pltpu


def _round_up(x: int, m: int) -> int:
    return (x + m - 1) // m * m


def _vmem_budget_bytes() -> int:
    """~80% of physical VMEM (52 MiB v7x / 102 MiB v6e,v5e); safe fallback."""
    try:
        cap = int(pltpu.get_tpu_info().vmem_capacity_bytes)
    except Exception:
        cap = 128 << 20
    return int(cap * 0.8)


def mlp_kernel(x_ref, w1t_ref, b1_ref, w2t_ref, b2_ref, o_ref):
    # x:   (tm, D_in_p) f32 or bf16   w1t: (D_in_p, H_p) bf16   b1: (1, H_p) f32
    # w2t: (H_p, H_p)   bf16          b2:  (1, H_p)      f32
    # o:   (tm, H_p)    f32           (lane-dense: H_p % 128 == 0)
    x = x_ref[...].astype(w1t_ref.dtype)                 # cast in-kernel (free)
    h = jnp.dot(x, w1t_ref[...], preferred_element_type=jnp.float32)
    h = jnp.maximum(h + b1_ref[...], 0.0)                # bias + ReLU in f32 (VPU)
    h = h.astype(w2t_ref.dtype)                          # bf16 operand for 2nd MXU pass
    out = jnp.dot(h, w2t_ref[...], preferred_element_type=jnp.float32) + b2_ref[...]
    o_ref[...] = out.astype(o_ref.dtype)


def init_mlp_params(key, input_dim, hidden_dim, dtype=jnp.float32):
    """Deterministic init mimicking nn.Linear's default U(-1/sqrt(fan_in), +)."""
    k1, k2, k3, k4 = jax.random.split(key, 4)
    bound1 = 1.0 / (input_dim ** 0.5)
    bound2 = 1.0 / (hidden_dim ** 0.5)
    w1 = jax.random.uniform(k1, (hidden_dim, input_dim), dtype, -bound1, bound1)
    b1 = jax.random.uniform(k2, (hidden_dim,), dtype, -bound1, bound1)
    w2 = jax.random.uniform(k3, (hidden_dim, hidden_dim), dtype, -bound2, bound2)
    b2 = jax.random.uniform(k4, (hidden_dim,), dtype, -bound2, bound2)
    return w1, b1, w2, b2


def prepare_params(w1, b1, w2, b2, compute_dtype=jnp.bfloat16):
    """One-time glue (hoisted out of the per-call path): transpose, pad, cast.

    w1: (H, D_in), b1: (H,), w2: (H, H), b2: (H,)  [PyTorch nn.Linear layout]
    Zero padding is exact: padded input columns hit zero weight rows, padded
    hidden units get zero weight+bias -> ReLU(0)=0, padded output columns are
    zero and sliced away by the wrapper when needed.
    """
    H, D_in = w1.shape
    D_in_p = _round_up(D_in, 128)
    H_p = _round_up(H, 128)
    w1t = jnp.zeros((D_in_p, H_p), compute_dtype).at[:D_in, :H].set(
        w1.T.astype(compute_dtype))
    w2t = jnp.zeros((H_p, H_p), compute_dtype).at[:H, :H].set(
        w2.T.astype(compute_dtype))
    b1p = jnp.zeros((1, H_p), jnp.float32).at[0, :H].set(b1.astype(jnp.float32))
    b2p = jnp.zeros((1, H_p), jnp.float32).at[0, :H].set(b2.astype(jnp.float32))
    return w1t, b1p, w2t, b2p


@partial(jax.jit, static_argnames=("hidden_dim",))
def mlp_forward(x, w1t_p, b1_p, w2t_p, b2_p, *, hidden_dim):
    """x: (B, D_in) f32; padded/transposed params come from prepare_params."""
    B, D_in = x.shape
    D_in_p, H_p = w1t_p.shape
    compute_dtype = w1t_p.dtype
    cds = jnp.dtype(compute_dtype).itemsize

    # Batch tiling: big tiles for big batches (fill the 256-wide MXU, amortize
    # ~0.35 us/step grid overhead); 16-row-aligned tiles for small batches
    # (clean bf16 sublane packing).
    if B >= 512:
        tm = 512
    elif B >= 256:
        tm = 256
    elif B >= 128:
        tm = 128
    else:
        tm = min(_round_up(B, 16), 128)
    B_p = _round_up(B, tm)
    num_tiles = B_p // tm
    grid = (num_tiles,)

    # Pad/cast activations only when actually required; in the aligned case x
    # goes straight into the kernel (bf16 cast happens in-kernel), avoiding an
    # extra full HBM pass over the activations.
    need_x_pad = (B_p != B) or (D_in_p != D_in)
    if need_x_pad:
        x_kernel = jnp.zeros((B_p, D_in_p), compute_dtype).at[:B, :D_in].set(
            x.astype(compute_dtype))
    else:
        x_kernel = x
    x_bytes = jnp.dtype(x_kernel.dtype).itemsize

    flops = 2 * B_p * (D_in_p * H_p + H_p * H_p)
    bytes_accessed = (B_p * D_in_p * x_bytes                 # x
                      + (D_in_p * H_p + H_p * H_p) * cds     # weights (resident, read once)
                      + 2 * H_p * 4                          # biases
                      + B_p * H_p * 4)                       # out

    # VMEM budget: double-buffered x/out tiles, SINGLE-buffered weight panels
    # and biases (Buffered(1)), plus f32 temporaries; capped generation-aware.
    vmem_est = (2 * tm * D_in_p * x_bytes
                + 2 * tm * H_p * 4
                + (D_in_p * H_p + H_p * H_p) * cds
                + 2 * H_p * 4
                + 2 * tm * H_p * 4)
    vmem_limit = int(min(max(vmem_est + (4 << 20), 32 << 20), _vmem_budget_bytes()))

    # Megacore split only when there is enough work to amortize the duplicated
    # weight-panel DMA into each core's private VMEM.
    semantics = ("parallel",) if num_tiles >= 4 else ("arbitrary",)

    single = pl.Buffered(1)   # grid-invariant operands: no second buffer
    out_p = pl.pallas_call(
        mlp_kernel,
        out_shape=jax.ShapeDtypeStruct((B_p, H_p), jnp.float32),
        grid_spec=pltpu.PrefetchScalarGridSpec(
            num_scalar_prefetch=0,
            grid=grid,
            in_specs=[
                pl.BlockSpec((tm, D_in_p), lambda i: (i, 0)),   # x: per-batch tile
                pl.BlockSpec((D_in_p, H_p), lambda i: (0, 0),
                             pipeline_mode=single),             # w1t: resident
                pl.BlockSpec((1, H_p), lambda i: (0, 0),
                             pipeline_mode=single),             # b1:  resident
                pl.BlockSpec((H_p, H_p), lambda i: (0, 0),
                             pipeline_mode=single),             # w2t: resident
                pl.BlockSpec((1, H_p), lambda i: (0, 0),
                             pipeline_mode=single),             # b2:  resident
            ],
            out_specs=pl.BlockSpec((tm, H_p), lambda i: (i, 0)),
        ),
        compiler_params=pltpu.CompilerParams(
            dimension_semantics=semantics,
            vmem_limit_bytes=vmem_limit,
        ),
        cost_estimate=pl.CostEstimate(
            flops=flops, transcendentals=0, bytes_accessed=bytes_accessed),
    )(x_kernel, w1t_p, b1_p, w2t_p, b2_p)

    # Slice only when padding was applied (padded batch rows carry bias
    # garbage, padded feature columns are zero) — aligned fast path returns
    # the lane-dense slab directly with no extra HBM round trip.
    if (B_p != B) or (H_p != hidden_dim):
        return out_p[:B, :hidden_dim]
    return out_p


if __name__ == "__main__":
    key = jax.random.PRNGKey(0)
    k_x, k_p = jax.random.split(key)

    batch, input_dim, hidden_dim = 2, 4, 32
    x = jax.random.normal(k_x, (batch, input_dim), dtype=jnp.float32)
    w1, b1, w2, b2 = init_mlp_params(k_p, input_dim, hidden_dim)

    # One-time parameter prep (transpose + pad + bf16 cast), hoisted out of
    # the per-call path.
    w1t_p, b1_p, w2t_p, b2_p = prepare_params(w1, b1, w2, b2)

    out = mlp_forward(x, w1t_p, b1_p, w2t_p, b2_p, hidden_dim=hidden_dim)
    jax.block_until_ready(out)
    assert out.shape == (batch, hidden_dim)

    # Cast-matched pure-JAX reference (same bf16 MXU operands, f32 accumulate,
    # f32 bias/ReLU) -> tight tolerance check of the kernel itself.
    cd = jnp.bfloat16
    h_ref = jnp.dot(x.astype(cd), w1.astype(cd).T,
                    preferred_element_type=jnp.float32) + b1
    h_ref = jnp.maximum(h_ref, 0.0).astype(cd)
    ref = jnp.dot(h_ref, w2.astype(cd).T,
                  preferred_element_type=jnp.float32) + b2
    assert jnp.allclose(out, ref, atol=1e-4, rtol=1e-4)

    # Loose sanity check against the full-f32 PyTorch-semantics forward
    # (difference is only the bf16 MXU-operand quantization).
    ref_f32 = jnp.maximum(x @ w1.T + b1, 0.0) @ w2.T + b2
    assert jnp.allclose(out, ref_f32, atol=5e-2, rtol=5e-2)

    print("KERNEL_OK")
</pallas_src>

<mosaic_0001>
module attributes {stable_mosaic.version = 11 : i64} {
  func.func @mlp_kernel(%arg0: i32, %arg1: memref<16x128xbf16, #tpu.memory_space<vmem>>, %arg2: memref<128x128xbf16, #tpu.memory_space<vmem>>, %arg3: memref<1x128xf32, #tpu.memory_space<vmem>>, %arg4: memref<128x128xbf16, #tpu.memory_space<vmem>>, %arg5: memref<1x128xf32, #tpu.memory_space<vmem>>, %arg6: memref<16x128xf32, #tpu.memory_space<vmem>>) attributes {dimension_semantics = [#tpu.dimension_semantics<arbitrary>], iteration_bounds = array<i64: 1>, scalar_prefetch = 0 : i64, scratch_operands = 0 : i64, tpu.core_type = #tpu.core_type<tc>, window_params = [{transform_indices = @transform_0, window_bounds = array<i64: 16, 128>}, {pipeline_mode = #tpu.pipeline_mode<synchronous>, transform_indices = @transform_1, window_bounds = array<i64: 128, 128>}, {pipeline_mode = #tpu.pipeline_mode<synchronous>, transform_indices = @transform_2, window_bounds = array<i64: 1, 128>}, {pipeline_mode = #tpu.pipeline_mode<synchronous>, transform_indices = @transform_3, window_bounds = array<i64: 128, 128>}, {pipeline_mode = #tpu.pipeline_mode<synchronous>, transform_indices = @transform_4, window_bounds = array<i64: 1, 128>}, {transform_indices = @transform_5, window_bounds = array<i64: 16, 128>}]} {
    %c0 = arith.constant 0 : index
    %c0_0 = arith.constant 0 : index
    %0 = vector.load %arg1[%c0, %c0_0] : memref<16x128xbf16, #tpu.memory_space<vmem>>, vector<16x128xbf16>
    %c0_1 = arith.constant 0 : index
    %c0_2 = arith.constant 0 : index
    %1 = vector.load %arg2[%c0_1, %c0_2] : memref<128x128xbf16, #tpu.memory_space<vmem>>, vector<128x128xbf16>
    %cst = arith.constant dense<0.000000e+00> : vector<16x128xf32>
    %2 = tpu.matmul %0, %1, %cst {dimension_numbers = #tpu.dot_dimension_numbers<[1], [0], [0], [1], [0, 0, 1, 1], [], []>} : vector<16x128xbf16>, vector<128x128xbf16>, vector<16x128xf32> -> vector<16x128xf32>
    %c0_3 = arith.constant 0 : index
    %c0_4 = arith.constant 0 : index
    %3 = vector.load %arg3[%c0_3, %c0_4] : memref<1x128xf32, #tpu.memory_space<vmem>>, vector<1x128xf32>
    %4 = vector.broadcast %3 : vector<1x128xf32> to vector<16x128xf32>
    %5 = arith.addf %2, %4 : vector<16x128xf32>
    %cst_5 = arith.constant 0.000000e+00 : f32
    %6 = vector.broadcast %cst_5 : f32 to vector<16x128xf32>
    %7 = arith.maximumf %5, %6 : vector<16x128xf32>
    %8 = arith.truncf %7 : vector<16x128xf32> to vector<16x128xbf16>
    %c0_6 = arith.constant 0 : index
    %c0_7 = arith.constant 0 : index
    %9 = vector.load %arg4[%c0_6, %c0_7] : memref<128x128xbf16, #tpu.memory_space<vmem>>, vector<128x128xbf16>
    %cst_8 = arith.constant dense<0.000000e+00> : vector<16x128xf32>
    %10 = tpu.matmul %8, %9, %cst_8 {dimension_numbers = #tpu.dot_dimension_numbers<[1], [0], [0], [1], [0, 0, 1, 1], [], []>} : vector<16x128xbf16>, vector<128x128xbf16>, vector<16x128xf32> -> vector<16x128xf32>
    %c0_9 = arith.constant 0 : index
    %c0_10 = arith.constant 0 : index
    %11 = vector.load %arg5[%c0_9, %c0_10] : memref<1x128xf32, #tpu.memory_space<vmem>>, vector<1x128xf32>
    %12 = vector.broadcast %11 : vector<1x128xf32> to vector<16x128xf32>
    %13 = arith.addf %10, %12 : vector<16x128xf32>
    %c0_11 = arith.constant 0 : index
    %c0_12 = arith.constant 0 : index
    %14 = vector.load %arg6[%c0_11, %c0_12] : memref<16x128xf32, #tpu.memory_space<vmem>>, vector<16x128xf32>
    tpu.vector_store %arg6[%c0_11, %c0_12], %13 {strides = array<i32>} : memref<16x128xf32, #tpu.memory_space<vmem>>, vector<16x128xf32>,
    return
  }
  func.func @transform_0(%arg0: i32) -> (i32, i32) {
    %c0_i32 = arith.constant 0 : i32
    %c0_i32_0 = arith.constant 0 : i32
    return %arg0, %c0_i32 : i32, i32
  }
  func.func @transform_1(%arg0: i32) -> (i32, i32) {
    %c0_i32 = arith.constant 0 : i32
    %c0_i32_0 = arith.constant 0 : i32
    %c0_i32_1 = arith.constant 0 : i32
    return %c0_i32, %c0_i32_0 : i32, i32
  }
  func.func @transform_2(%arg0: i32) -> (i32, i32) {
    %c0_i32 = arith.constant 0 : i32
    %c0_i32_0 = arith.constant 0 : i32
    %c0_i32_1 = arith.constant 0 : i32
    return %c0_i32, %c0_i32_0 : i32, i32
  }
  func.func @transform_3(%arg0: i32) -> (i32, i32) {
    %c0_i32 = arith.constant 0 : i32
    %c0_i32_0 = arith.constant 0 : i32
    %c0_i32_1 = arith.constant 0 : i32
    return %c0_i32, %c0_i32_0 : i32, i32
  }
  func.func @transform_4(%arg0: i32) -> (i32, i32) {
    %c0_i32 = arith.constant 0 : i32
    %c0_i32_0 = arith.constant 0 : i32
    %c0_i32_1 = arith.constant 0 : i32
    return %c0_i32, %c0_i32_0 : i32, i32
  }
  func.func @transform_5(%arg0: i32) -> (i32, i32) {
    %c0_i32 = arith.constant 0 : i32
    %c0_i32_0 = arith.constant 0 : i32
    return %arg0, %c0_i32 : i32, i32
  }
}

</mosaic_0001>

<llo_original>
// kernel: mlp_forward.1
$region0: #{mlp_forward.1}
  #allocation0 [shape = 'u32[]', space=smem, size = 0x4, offset = 0x4, fixed_abs, tag = 'smem constant byte address 0x4 - core index']
  #allocation1 [shape = 'u32[144,128]{1,0:T(1,128)}', space=vmem, size = 0x12000, scoped, tag = 'internal scratch']
  %s0 = inlined_call_operand.vmem [shape: bf16[16,128], index: 0, kind: input, shape index: {}]
  %s1 = inlined_call_operand.hbm [shape: bf16[128,128], index: 1, kind: input, shape index: {}]
  %s2 = inlined_call_operand.vmem [shape: f32[1,128], index: 2, kind: input, shape index: {}]
  %s3 = inlined_call_operand.hbm [shape: bf16[128,128], index: 3, kind: input, shape index: {}]
  %s4 = inlined_call_operand.vmem [shape: f32[1,128], index: 4, kind: input, shape index: {}]
  %s5 = inlined_call_operand.vmem [shape: f32[16,128], index: 5, kind: output, shape index: {}]
  %s6 = sld [smem:[#allocation0]]
  $region38: #{mlp_forward.1} parent=0
    _
  %s8 = ssub.s32 1, %s6
  %s9 = scalar_select 0, %s8, %s6
  $region1: #{mlp_forward.1} parent=0
    #allocation2 [shape = 'u8[32768]{0}', space=vmem, size = 0x8000, scoped, tag = 'input window, operand 1, single buffered']
    #allocation3 [shape = 's32[1]{0}', space=sflag, size = 0x4, scoped, tag = 'scoped memory for mlp_forward.1']
    #allocation4 [shape = 'u8[32768]{0}', space=vmem, size = 0x8000, scoped, tag = 'input window, operand 3, single buffered']
    #allocation5 [shape = 's32[1]{0}', space=sflag, size = 0x4, scoped, tag = 'scoped memory for mlp_forward.1']
    %10 = vsyncpa [#allocation3], 0
    %11 = vsyncpa [#allocation5], 0
    // Predicated region
    $region2: #{mlp_forward.1} parent=1 // pred_check
      _
    $region3: #{mlp_forward.1} parent=1 // pred_check_branch
      %13 = sbr.rel (0) target = $region5
    $region4: #{mlp_forward.1} parent=1 // pred_region
      _
    $region5: #{mlp_forward.1} parent=1 // pred_fallthru
      _
    // Predicated region
    $region6: #{mlp_forward.1} parent=1 // pred_check
      _
    $region7: #{mlp_forward.1} parent=1 // pred_check_branch
      %15 = sbr.rel (0) target = $region9
    $region8: #{mlp_forward.1} parent=1 // pred_region
      %s17 = ssub.s32 1024, 1024
      %18 = vsyncadd [#allocation3], %s17
      %s19 = sshll.u32 [#allocation2], 4
      %s20 = int_to_ptr.vmem [resolvable:$true] %s19
      %25 = dma.hbm_to_vmem [thread:$0]  %s1, 1024, %s20, [#allocation3], 64, 64, 4
    $region9: #{mlp_forward.1} parent=1 // pred_fallthru
      _
    // Predicated region
    $region10: #{mlp_forward.1} parent=1 // pred_check
      _
    $region11: #{mlp_forward.1} parent=1 // pred_check_branch
      %27 = sbr.rel (0) target = $region13
    $region12: #{mlp_forward.1} parent=1 // pred_region
      _
    $region13: #{mlp_forward.1} parent=1 // pred_fallthru
      _
    // Predicated region
    $region14: #{mlp_forward.1} parent=1 // pred_check
      _
    $region15: #{mlp_forward.1} parent=1 // pred_check_branch
      %29 = sbr.rel (0) target = $region17
    $region16: #{mlp_forward.1} parent=1 // pred_region
      %s31 = ssub.s32 1024, 1024
      %32 = vsyncadd [#allocation5], %s31
      %s33 = sshll.u32 [#allocation4], 4
      %s34 = int_to_ptr.vmem [resolvable:$true] %s33
      %39 = dma.hbm_to_vmem [thread:$0]  %s3, 1024, %s34, [#allocation5], 64, 64, 4
    $region17: #{mlp_forward.1} parent=1 // pred_fallthru
      _
    // Predicated region
    $region18: #{mlp_forward.1} parent=1 // pred_check
      _
    $region19: #{mlp_forward.1} parent=1 // pred_check_branch
      %41 = sbr.rel (0) target = $region21
    $region20: #{mlp_forward.1} parent=1 // pred_region
      _
    $region21: #{mlp_forward.1} parent=1 // pred_fallthru
      _
    // Predicated region
    $region22: #{mlp_forward.1} parent=1 // pred_check
      _
    $region23: #{mlp_forward.1} parent=1 // pred_check_branch
      %43 = sbr.rel (0) target = $region25
    $region24: #{mlp_forward.1} parent=1 // pred_region
      %44 = dma.done [#allocation3], 1024
    $region25: #{mlp_forward.1} parent=1 // pred_fallthru
      _
    // Predicated region
    $region26: #{mlp_forward.1} parent=1 // pred_check
      _
    $region27: #{mlp_forward.1} parent=1 // pred_check_branch
      %46 = sbr.rel (0) target = $region29
    $region28: #{mlp_forward.1} parent=1 // pred_region
      %47 = dma.done [#allocation5], 1024
    $region29: #{mlp_forward.1} parent=1 // pred_fallthru
      _
    %v49 = vld [vmem:[%s0] sm:$0xf]
    %v50 = vld [vmem:[%s0 + $0x4] sm:$0xf]
    %v51 = vld [vmem:[#allocation2] sm:$0xf]
    %v52 = vld [vmem:[#allocation2 + $0x4] sm:$0xf]
    %v53 = vld [vmem:[#allocation2 + $0x8] sm:$0xf]
    %v54 = vld [vmem:[#allocation2 + $0xc] sm:$0xf]
    %v55 = vld [vmem:[#allocation2 + $0x10] sm:$0xf]
    %v56 = vld [vmem:[#allocation2 + $0x14] sm:$0xf]
    %v57 = vld [vmem:[#allocation2 + $0x18] sm:$0xf]
    %v58 = vld [vmem:[#allocation2 + $0x1c] sm:$0xf]
    %v59 = vld [vmem:[#allocation2 + $0x20] sm:$0xf]
    %v60 = vld [vmem:[#allocation2 + $0x24] sm:$0xf]
    %v61 = vld [vmem:[#allocation2 + $0x28] sm:$0xf]
    %v62 = vld [vmem:[#allocation2 + $0x2c] sm:$0xf]
    %v63 = vld [vmem:[#allocation2 + $0x30] sm:$0xf]
    %v64 = vld [vmem:[#allocation2 + $0x34] sm:$0xf]
    %v65 = vld [vmem:[#allocation2 + $0x38] sm:$0xf]
    %v66 = vld [vmem:[#allocation2 + $0x3c] sm:$0xf]
    %v67 = vld [vmem:[%s2] sm:$0x1]
    %v69 = vlaneseq
    %v70 = vshrl.u32 %v69, 7
    %v71 = vsub.s32 0, %v70
    %v72 = vrot.slane %v67, %v71
    %v76 = vunpack.c.l.b16 %v49
    %v77 = vunpack.c.l.b16 %v50
    %v78 = vpack.c.b16 %v77, %v76
    %v96 = vunpack.c.l.b16 %v51
    %v97 = vunpack.c.l.b16 %v52
    %v98 = vunpack.c.l.b16 %v53
    %v99 = vunpack.c.l.b16 %v54
    %v100 = vunpack.c.l.b16 %v55
    %v101 = vunpack.c.l.b16 %v56
    %v102 = vunpack.c.l.b16 %v57
    %v103 = vunpack.c.l.b16 %v58
    %v104 = vunpack.c.l.b16 %v59
    %v105 = vunpack.c.l.b16 %v60
    %v106 = vunpack.c.l.b16 %v61
    %v107 = vunpack.c.l.b16 %v62
    %v108 = vunpack.c.l.b16 %v63
    %v109 = vunpack.c.l.b16 %v64
    %v110 = vunpack.c.l.b16 %v65
    %v111 = vunpack.c.l.b16 %v66
    %v112 = vpack.c.b16 %v97, %v96
    %v113 = vpack.c.b16 %v99, %v98
    %v114 = vpack.c.b16 %v101, %v100
    %v115 = vpack.c.b16 %v103, %v102
    %v116 = vpack.c.b16 %v105, %v104
    %v117 = vpack.c.b16 %v107, %v106
    %v118 = vpack.c.b16 %v109, %v108
    %v119 = vpack.c.b16 %v111, %v110
    %128 = vmatprep.subr.bf16.mxu0 0
    %129 = vmatpush1.bf16.msra.mxu0 %v119
    %130 = vmatprep.subr.bf16.mxu0 0
    %131 = vmatpush1.bf16.msra.mxu0 %v118
    %132 = vmatprep.subr.bf16.mxu0 0
    %133 = vmatpush1.bf16.msra.mxu0 %v117
    %134 = vmatprep.subr.bf16.mxu0 0
    %135 = vmatpush1.bf16.msra.mxu0 %v116
    %136 = vmatprep.subr.bf16.mxu0 0
    %137 = vmatpush1.bf16.msra.mxu0 %v115
    %138 = vmatprep.subr.bf16.mxu0 0
    %139 = vmatpush1.bf16.msra.mxu0 %v114
    %140 = vmatprep.subr.bf16.mxu0 0
    %141 = vmatpush1.bf16.msra.mxu0 %v113
    %142 = vmatprep.subr.bf16.mxu0 0
    %143 = vmatpush1.bf16.msra.mxu0 %v112
    %144 = vmatprep.subr.bf16.mxu0 0
    %145 = vmatpush2.bf16.msra.mxu0 0
    %146 = vmatprep.subr.bf16.mxu0 0
    %147 = vmatpush2.bf16.msra.mxu0 0
    %148 = vmatprep.subr.bf16.mxu0 0
    %149 = vmatpush2.bf16.msra.mxu0 0
    %150 = vmatprep.subr.bf16.mxu0 0
    %151 = vmatpush2.bf16.msra.mxu0 0
    %152 = vmatprep.subr.bf16.mxu0 0
    %153 = vmatpush2.bf16.msra.mxu0 0
    %154 = vmatprep.subr.bf16.mxu0 0
    %155 = vmatpush2.bf16.msra.mxu0 0
    %156 = vmatprep.subr.bf16.mxu0 0
    %157 = vmatpush2.bf16.msra.mxu0 0
    %158 = vmatprep.subr.bf16.mxu0 0
    %159 = vmatpush2.bf16.msra.mxu0 0
    %160 = vmatprep.mubr.bf16.mxu0 0
    %161 = vmatmul.mubr.bf16.gmra.mxu0 %v78
    %v162 = vpop.f32.mrf.mxu0
    %v163 = vadd.f32 %v72, %v162
    %v164 = vpop.f32.mrf.mxu0
    %v165 = vpop.f32.mrf.mxu0
    %v166 = vadd.f32 %v72, %v165
    %v167 = vpop.f32.mrf.mxu0
    %168 = vdwg.mxu0
    %v169 = vmax.f32 %v163, 0.0
    %v170 = vmax.f32 %v166, 0.0
    %v171 = vpack.c.bf16 %v170, %v169
    %v172 = vld [vmem:[#allocation4] sm:$0xf]
    %v173 = vld [vmem:[#allocation4 + $0x4] sm:$0xf]
    %v174 = vld [vmem:[#allocation4 + $0x8] sm:$0xf]
    %v175 = vld [vmem:[#allocation4 + $0xc] sm:$0xf]
    %v176 = vld [vmem:[#allocation4 + $0x10] sm:$0xf]
    %v177 = vld [vmem:[#allocation4 + $0x14] sm:$0xf]
    %v178 = vld [vmem:[#allocation4 + $0x18] sm:$0xf]
    %v179 = vld [vmem:[#allocation4 + $0x1c] sm:$0xf]
    %v180 = vld [vmem:[#allocation4 + $0x20] sm:$0xf]
    %v181 = vld [vmem:[#allocation4 + $0x24] sm:$0xf]
    %v182 = vld [vmem:[#allocation4 + $0x28] sm:$0xf]
    %v183 = vld [vmem:[#allocation4 + $0x2c] sm:$0xf]
    %v184 = vld [vmem:[#allocation4 + $0x30] sm:$0xf]
    %v185 = vld [vmem:[#allocation4 + $0x34] sm:$0xf]
    %v186 = vld [vmem:[#allocation4 + $0x38] sm:$0xf]
    %v187 = vld [vmem:[#allocation4 + $0x3c] sm:$0xf]
    %v188 = vld [vmem:[%s4] sm:$0x1]
    %v190 = vlaneseq
    %v191 = vshrl.u32 %v190, 7
    %v192 = vsub.s32 0, %v191
    %v193 = vrot.slane %v188, %v192
    %v211 = vunpack.c.l.b16 %v172
    %v212 = vunpack.c.l.b16 %v173
    %v213 = vunpack.c.l.b16 %v174
    %v214 = vunpack.c.l.b16 %v175
    %v215 = vunpack.c.l.b16 %v176
    %v216 = vunpack.c.l.b16 %v177
    %v217 = vunpack.c.l.b16 %v178
    %v218 = vunpack.c.l.b16 %v179
    %v219 = vunpack.c.l.b16 %v180
    %v220 = vunpack.c.l.b16 %v181
    %v221 = vunpack.c.l.b16 %v182
    %v222 = vunpack.c.l.b16 %v183
    %v223 = vunpack.c.l.b16 %v184
    %v224 = vunpack.c.l.b16 %v185
    %v225 = vunpack.c.l.b16 %v186
    %v226 = vunpack.c.l.b16 %v187
    %v227 = vpack.c.b16 %v212, %v211
    %v228 = vpack.c.b16 %v214, %v213
    %v229 = vpack.c.b16 %v216, %v215
    %v230 = vpack.c.b16 %v218, %v217
    %v231 = vpack.c.b16 %v220, %v219
    %v232 = vpack.c.b16 %v222, %v221
    %v233 = vpack.c.b16 %v224, %v223
    %v234 = vpack.c.b16 %v226, %v225
    %243 = vmatprep.subr.bf16.mxu0 0
    %244 = vmatpush1.bf16.msra.mxu0 %v234
    %245 = vmatprep.subr.bf16.mxu0 0
    %246 = vmatpush1.bf16.msra.mxu0 %v233
    %247 = vmatprep.subr.bf16.mxu0 0
    %248 = vmatpush1.bf16.msra.mxu0 %v232
    %249 = vmatprep.subr.bf16.mxu0 0
    %250 = vmatpush1.bf16.msra.mxu0 %v231
    %251 = vmatprep.subr.bf16.mxu0 0
    %252 = vmatpush1.bf16.msra.mxu0 %v230
    %253 = vmatprep.subr.bf16.mxu0 0
    %254 = vmatpush1.bf16.msra.mxu0 %v229
    %255 = vmatprep.subr.bf16.mxu0 0
    %256 = vmatpush1.bf16.msra.mxu0 %v228
    %257 = vmatprep.subr.bf16.mxu0 0
    %258 = vmatpush1.bf16.msra.mxu0 %v227
    %259 = vmatprep.subr.bf16.mxu0 0
    %260 = vmatpush2.bf16.msra.mxu0 0
    %261 = vmatprep.subr.bf16.mxu0 0
    %262 = vmatpush2.bf16.msra.mxu0 0
    %263 = vmatprep.subr.bf16.mxu0 0
    %264 = vmatpush2.bf16.msra.mxu0 0
    %265 = vmatprep.subr.bf16.mxu0 0
    %266 = vmatpush2.bf16.msra.mxu0 0
    %267 = vmatprep.subr.bf16.mxu0 0
    %268 = vmatpush2.bf16.msra.mxu0 0
    %269 = vmatprep.subr.bf16.mxu0 0
    %270 = vmatpush2.bf16.msra.mxu0 0
    %271 = vmatprep.subr.bf16.mxu0 0
    %272 = vmatpush2.bf16.msra.mxu0 0
    %273 = vmatprep.subr.bf16.mxu0 0
    %274 = vmatpush2.bf16.msra.mxu0 0
    %275 = vmatprep.mubr.bf16.mxu0 0
    %276 = vmatmul.mubr.bf16.gmra.mxu0 %v171
    %v277 = vpop.f32.mrf.mxu0
    %v278 = vadd.f32 %v193, %v277
    %v279 = vpop.f32.mrf.mxu0
    %v280 = vpop.f32.mrf.mxu0
    %v281 = vadd.f32 %v193, %v280
    %v282 = vpop.f32.mrf.mxu0
    %283 = vdwg.mxu0
    %284 = vst [vmem:[%s5] sm:$0xff] %v278
    %285 = vst [vmem:[%s5 + $0x8] sm:$0xff] %v281
    // Predicated region
    $region30: #{mlp_forward.1} parent=1 // pred_check
      _
    $region31: #{mlp_forward.1} parent=1 // pred_check_branch
      %287 = sbr.rel (0) target = $region33
    $region32: #{mlp_forward.1} parent=1 // pred_region
      _
    $region33: #{mlp_forward.1} parent=1 // pred_fallthru
      _
    // Predicated region
    $region34: #{mlp_forward.1} parent=1 // pred_check
      _
    $region35: #{mlp_forward.1} parent=1 // pred_check_branch
      %289 = sbr.rel (0) target = $region37
    $region36: #{mlp_forward.1} parent=1 // pred_region
      _
    $region37: #{mlp_forward.1} parent=1 // pred_fallthru
      _
    %290 = vsyncpa [#allocation3], 1
    %291 = vsyncpa [#allocation5], 1

</llo_original>
